<compile_context>
chip_gen: v7x
topology: tpu7x:2x2x1
jax: 0.10.0
libtpu: 0.0.40
codegen_flags: <defaults>
</compile_context>

<pallas_src>
import functools

import jax
import jax.numpy as jnp
from jax.experimental import pallas as pl
from jax.experimental.pallas import tpu as pltpu


def _round_up(x, m):
    return (x + m - 1) // m * m


def temporal_block_kernel(x_ref, w1_ref, b1_ref, w2_ref, b2_ref, wd_ref, bd_ref,
                          o_ref, *, rows, pad, K, dilation, seg_len):
    """One batch-tile per grid step, batch flattened into the sublane axis.

    x_ref:  (rows, Cin_p)        flattened segments: [pad zeros | L data] per batch
    w1_ref: (K*Cin_p,  Cout_p)   conv1 weight, taps folded into the contraction
    w2_ref: (K*Cout_p, Cout_p)   conv2 weight, same layout
    wd_ref: (Cin_p, Cout_p)      1x1 downsample weight
    b*_ref: (1, Cout_p)          biases (f32)
    o_ref:  (rows, Cout_p)       output in the same padded-segment layout
                                 (per-segment first `pad` rows are junk and are
                                  sliced off in the wrapper)
    """
    cin_p = x_ref.shape[-1]
    cout_p = o_ref.shape[-1]

    x = x_ref[...]                                            # (rows, Cin_p)

    # rows whose within-segment index < pad are the causal zero prefix.
    local = jax.lax.broadcasted_iota(jnp.int32, (rows, 1), 0) % seg_len
    valid = local >= pad                                      # (rows, 1)

    # hoisted bias broadcasts
    b1 = b1_ref[...]
    b2 = b2_ref[...]
    bd = bd_ref[...]

    # ---- conv1: im2col over the K dilated taps -> single deep MXU matmul ---
    x_ext = jnp.concatenate([jnp.zeros((pad, cin_p), x.dtype), x], axis=0)
    x_taps = jnp.concatenate(
        [x_ext[k * dilation:k * dilation + rows, :] for k in range(K)], axis=-1)
    h1 = jnp.dot(x_taps, w1_ref[...], preferred_element_type=jnp.float32)
    h1 = jnp.maximum(h1 + b1, 0.0)
    # zero the per-segment causal-pad rows so conv2 stays causal (and does not
    # mix adjacent segments / batch elements).
    h1 = jnp.where(valid, h1, 0.0)
    # dropout1: identity at inference

    # ---- conv2: same im2col trick ------------------------------------------
    h1c = h1.astype(w2_ref.dtype)
    h1_ext = jnp.concatenate([jnp.zeros((pad, cout_p), h1c.dtype), h1c], axis=0)
    h1_taps = jnp.concatenate(
        [h1_ext[k * dilation:k * dilation + rows, :] for k in range(K)], axis=-1)
    h2 = jnp.dot(h1_taps, w2_ref[...], preferred_element_type=jnp.float32)
    h2 = jnp.maximum(h2 + b2, 0.0)
    # dropout2: identity at inference

    # ---- residual (1x1 conv downsample) + final ReLU ------------------------
    res = jnp.dot(x, wd_ref[...], preferred_element_type=jnp.float32) + bd
    o_ref[...] = jnp.maximum(h2 + res, 0.0).astype(o_ref.dtype)


def temporal_block(x_nlc, w1_kio, b1, w2_koo, b2, wd_io, bd, *,
                   kernel_size, dilation, padding,
                   b_tile=None, compute_dtype=jnp.float32, lane=128):
    """x_nlc: (N, L, C_in). Weights: w1 (K,C_in,C_out), w2 (K,C_out,C_out),
    wd (C_in,C_out); biases 1-D. Returns (N, L, C_out) float32.

    compute_dtype=jnp.bfloat16 is recommended on v6e/v7x for large problems
    (accumulation stays f32); float32 is the default so the numerical check
    below stays tight.
    """
    N, L, C_in = x_nlc.shape
    K = kernel_size
    C_out = w1_kio.shape[2]
    pad = padding
    assert pad == (K - 1) * dilation and pad > 0, \
        "TemporalBlock uses padding = (kernel_size-1)*dilation"
    seg_len = L + pad                               # rows per flattened segment

    cin_p = _round_up(C_in, lane)
    cout_p = _round_up(C_out, lane)

    # ---- lane-pad channels (extra in-channels are zero so they contribute
    # nothing; extra out-channels compute relu(0+0)=0 and are sliced off) -----
    x_p = jnp.pad(x_nlc, ((0, 0), (0, 0), (0, cin_p - C_in))).astype(compute_dtype)
    w1_p = jnp.pad(w1_kio, ((0, 0), (0, cin_p - C_in), (0, cout_p - C_out)))
    w2_p = jnp.pad(w2_koo, ((0, 0), (0, cout_p - C_out), (0, cout_p - C_out)))
    wd_p = jnp.pad(wd_io, ((0, cin_p - C_in), (0, cout_p - C_out)))
    b1_p = jnp.pad(b1, (0, cout_p - C_out))[None, :].astype(jnp.float32)
    b2_p = jnp.pad(b2, (0, cout_p - C_out))[None, :].astype(jnp.float32)
    bd_p = jnp.pad(bd, (0, cout_p - C_out))[None, :].astype(jnp.float32)

    w1_flat = w1_p.reshape(K * cin_p, cout_p).astype(compute_dtype)
    w2_flat = w2_p.reshape(K * cout_p, cout_p).astype(compute_dtype)
    wd_flat = wd_p.astype(compute_dtype)

    # ---- flatten batch into the sublane axis: each segment = [pad zeros | L]
    x_seg = jnp.pad(x_p, ((0, 0), (pad, 0), (0, 0)))            # (N, seg_len, Cin_p)
    R = N * seg_len
    x_flat = x_seg.reshape(R, cin_p)

    if b_tile is None:
        b_tile = N                                   # one grid step at test sizes
    assert N % b_tile == 0
    num_tiles = N // b_tile
    r_tile = b_tile * seg_len
    assert num_tiles == 1 or r_tile % 8 == 0, "batch-tile rows must be 8-aligned"

    kern = functools.partial(temporal_block_kernel, rows=r_tile, pad=pad,
                             K=K, dilation=dilation, seg_len=seg_len)

    itemsize = jnp.dtype(compute_dtype).itemsize
    flops = 2 * R * (K * cin_p * cout_p + K * cout_p * cout_p + cin_p * cout_p)
    bytes_accessed = (itemsize * (x_flat.size + w1_flat.size + w2_flat.size + wd_flat.size)
                      + 4 * (3 * cout_p + R * cout_p))

    out_flat = pl.pallas_call(
        kern,
        out_shape=jax.ShapeDtypeStruct((R, cout_p), jnp.float32),
        grid_spec=pltpu.PrefetchScalarGridSpec(
            num_scalar_prefetch=0,
            grid=(num_tiles,),
            in_specs=[
                pl.BlockSpec((r_tile, cin_p), lambda i: (i, 0)),
                pl.BlockSpec((K * cin_p, cout_p), lambda i: (0, 0)),
                pl.BlockSpec((1, cout_p), lambda i: (0, 0)),
                pl.BlockSpec((K * cout_p, cout_p), lambda i: (0, 0)),
                pl.BlockSpec((1, cout_p), lambda i: (0, 0)),
                pl.BlockSpec((cin_p, cout_p), lambda i: (0, 0)),
                pl.BlockSpec((1, cout_p), lambda i: (0, 0)),
            ],
            out_specs=pl.BlockSpec((r_tile, cout_p), lambda i: (i, 0)),
        ),
        compiler_params=pltpu.CompilerParams(dimension_semantics=("parallel",)),
        cost_estimate=pl.CostEstimate(flops=int(flops), transcendentals=0,
                                      bytes_accessed=int(bytes_accessed)),
    )(x_flat, w1_flat, b1_p, w2_flat, b2_p, wd_flat, bd_p)

    # drop the per-segment causal-pad rows and the lane-padded channels
    out = out_flat.reshape(N, seg_len, cout_p)[:, pad:, :C_out]   # (N, L, C_out)
    return out


def _weight_norm(v, g):
    """PyTorch weight_norm (dim=0): w = g * v / ||v|| with norm over (in, k)."""
    norm = jnp.sqrt(jnp.sum(v * v, axis=(1, 2), keepdims=True))
    return g[:, None, None] * v / norm


def _ref_forward(x_ncl, w1_oik, b1, w2_oik, b2, wd_oik, bd, *, dilation, padding):
    """Pure-JAX reference mirroring the PyTorch forward (inference)."""
    def conv(x, w, b):
        y = jax.lax.conv_general_dilated(
            x, w, window_strides=(1,), padding=[(padding, padding)],
            rhs_dilation=(dilation,), dimension_numbers=("NCH", "OIH", "NCH"))
        return y[:, :, :-padding] + b[None, :, None]          # chomp + bias

    h = jax.nn.relu(conv(x_ncl, w1_oik, b1))
    h = jax.nn.relu(conv(h, w2_oik, b2))
    res = jax.lax.conv_general_dilated(
        x_ncl, wd_oik, window_strides=(1,), padding=[(0, 0)],
        dimension_numbers=("NCH", "OIH", "NCH")) + bd[None, :, None]
    return jax.nn.relu(h + res)


if __name__ == "__main__":
    # Module config (TCN-style causal block)
    n_inputs, n_outputs = 4, 8
    kernel_size, stride, dilation = 3, 1, 2
    padding = (kernel_size - 1) * dilation      # 4
    N, L = 2, 16

    key = jax.random.PRNGKey(0)
    ks = jax.random.split(key, 8)

    # PyTorch-layout inputs/params, deterministic init
    x_ncl = jax.random.normal(ks[0], (N, n_inputs, L), jnp.float32)

    v1 = 0.01 * jax.random.normal(ks[1], (n_outputs, n_inputs, kernel_size), jnp.float32)
    g1 = 1.0 + 0.1 * jax.random.normal(ks[2], (n_outputs,), jnp.float32)
    b1 = 0.05 * jax.random.normal(ks[3], (n_outputs,), jnp.float32)
    v2 = 0.01 * jax.random.normal(ks[4], (n_outputs, n_outputs, kernel_size), jnp.float32)
    g2 = 1.0 + 0.1 * jax.random.normal(ks[5], (n_outputs,), jnp.float32)
    b2 = 0.05 * jax.random.normal(ks[6], (n_outputs,), jnp.float32)
    wd_oik = 0.01 * jax.random.normal(ks[7], (n_outputs, n_inputs, 1), jnp.float32)
    bd = jnp.zeros((n_outputs,), jnp.float32)

    # effective (weight-normed) conv weights, PyTorch layout (C_out, C_in, K)
    w1_oik = _weight_norm(v1, g1)
    w2_oik = _weight_norm(v2, g2)

    # kernel-layout params
    x_nlc = jnp.transpose(x_ncl, (0, 2, 1))                    # (N, L, C_in)
    w1_k = jnp.transpose(w1_oik, (2, 1, 0))                    # (K, C_in, C_out)
    w2_k = jnp.transpose(w2_oik, (2, 1, 0))                    # (K, C_out, C_out)
    wd_k = jnp.transpose(wd_oik[:, :, 0], (1, 0))              # (C_in, C_out)

    out_nlc = temporal_block(x_nlc, w1_k, b1, w2_k, b2, wd_k, bd,
                             kernel_size=kernel_size, dilation=dilation,
                             padding=padding)
    out_nlc = jax.block_until_ready(out_nlc)
    out_ncl = jnp.transpose(out_nlc, (0, 2, 1))                # back to PyTorch NCL

    ref = _ref_forward(x_ncl, w1_oik, b1, w2_oik, b2, wd_oik, bd,
                       dilation=dilation, padding=padding)
    assert out_ncl.shape == (N, n_outputs, L)
    assert jnp.allclose(out_ncl, ref, atol=1e-5, rtol=1e-5), "mismatch vs reference"

    # TODO(synk): dropout is identity (inference); training-mode dropout masks not implemented.
    print("KERNEL_OK")
</pallas_src>

<mosaic_0001>
module attributes {stable_mosaic.version = 11 : i64} {
  func.func @temporal_block_kernel(%arg0: i32, %arg1: memref<40x128xf32, #tpu.memory_space<vmem>>, %arg2: memref<384x128xf32, #tpu.memory_space<vmem>>, %arg3: memref<1x128xf32, #tpu.memory_space<vmem>>, %arg4: memref<384x128xf32, #tpu.memory_space<vmem>>, %arg5: memref<1x128xf32, #tpu.memory_space<vmem>>, %arg6: memref<128x128xf32, #tpu.memory_space<vmem>>, %arg7: memref<1x128xf32, #tpu.memory_space<vmem>>, %arg8: memref<40x128xf32, #tpu.memory_space<vmem>>) attributes {dimension_semantics = [#tpu.dimension_semantics<parallel>], iteration_bounds = array<i64: 1>, scalar_prefetch = 0 : i64, scratch_operands = 0 : i64, tpu.core_type = #tpu.core_type<tc>, window_params = [{transform_indices = @transform_0, window_bounds = array<i64: 40, 128>}, {pipeline_mode = #tpu.pipeline_mode<synchronous>, transform_indices = @transform_1, window_bounds = array<i64: 384, 128>}, {pipeline_mode = #tpu.pipeline_mode<synchronous>, transform_indices = @transform_2, window_bounds = array<i64: 1, 128>}, {pipeline_mode = #tpu.pipeline_mode<synchronous>, transform_indices = @transform_3, window_bounds = array<i64: 384, 128>}, {pipeline_mode = #tpu.pipeline_mode<synchronous>, transform_indices = @transform_4, window_bounds = array<i64: 1, 128>}, {pipeline_mode = #tpu.pipeline_mode<synchronous>, transform_indices = @transform_5, window_bounds = array<i64: 128, 128>}, {pipeline_mode = #tpu.pipeline_mode<synchronous>, transform_indices = @transform_6, window_bounds = array<i64: 1, 128>}, {transform_indices = @transform_7, window_bounds = array<i64: 40, 128>}]} {
    %c0 = arith.constant 0 : index
    %c0_0 = arith.constant 0 : index
    %0 = vector.load %arg1[%c0, %c0_0] : memref<40x128xf32, #tpu.memory_space<vmem>>, vector<40x128xf32>
    %1 = tpu.iota {dimensions = array<i32: 0>} : vector<40x1xi32>
    %c20_i32 = arith.constant 20 : i32
    %c0_i32 = arith.constant 0 : i32
    %2 = arith.cmpi eq, %c20_i32, %c0_i32 : i32
    %c1_i32 = arith.constant 1 : i32
    %3 = arith.select %2, %c1_i32, %c20_i32 : i32
    %4 = vector.broadcast %3 : i32 to vector<40x1xi32>
    %5 = arith.remsi %1, %4 : vector<40x1xi32>
    %c0_i32_1 = arith.constant 0 : i32
    %6 = vector.broadcast %c0_i32_1 : i32 to vector<40x1xi32>
    %7 = arith.cmpi ne, %5, %6 : vector<40x1xi32>
    %c0_i32_2 = arith.constant 0 : i32
    %8 = vector.broadcast %c0_i32_2 : i32 to vector<40x1xi32>
    %9 = arith.cmpi slt, %5, %8 : vector<40x1xi32>
    %c0_i32_3 = arith.constant 0 : i32
    %10 = arith.cmpi slt, %3, %c0_i32_3 : i32
    %11 = vector.broadcast %10 : i1 to vector<40x1xi1>
    %12 = vector.broadcast %11 : vector<40x1xi1> to vector<40x1xi1>
    %13 = arith.xori %9, %12 : vector<40x1xi1>
    %14 = arith.andi %13, %7 : vector<40x1xi1>
    %15 = vector.broadcast %3 : i32 to vector<40x1xi32>
    %16 = arith.addi %5, %15 : vector<40x1xi32>
    %17 = arith.select %14, %16, %5 : vector<40x1xi1>, vector<40x1xi32>
    %c4_i32 = arith.constant 4 : i32
    %18 = vector.broadcast %c4_i32 : i32 to vector<40x1xi32>
    %19 = arith.cmpi sge, %17, %18 : vector<40x1xi32>
    %c0_4 = arith.constant 0 : index
    %c0_5 = arith.constant 0 : index
    %20 = vector.load %arg3[%c0_4, %c0_5] : memref<1x128xf32, #tpu.memory_space<vmem>>, vector<1x128xf32>
    %c0_6 = arith.constant 0 : index
    %c0_7 = arith.constant 0 : index
    %21 = vector.load %arg5[%c0_6, %c0_7] : memref<1x128xf32, #tpu.memory_space<vmem>>, vector<1x128xf32>
    %c0_8 = arith.constant 0 : index
    %c0_9 = arith.constant 0 : index
    %22 = vector.load %arg7[%c0_8, %c0_9] : memref<1x128xf32, #tpu.memory_space<vmem>>, vector<1x128xf32>
    %cst = arith.constant 0.000000e+00 : f32
    %23 = vector.broadcast %cst : f32 to vector<4x128xf32>
    %24 = tpu.concatenate %23, %0 in 0 : vector<4x128xf32>, vector<40x128xf32> -> vector<44x128xf32>
    %25 = vector.extract_strided_slice %24 {offsets = [0, 0], sizes = [40, 128], strides = [1, 1]} : vector<44x128xf32> to vector<40x128xf32>
    %26 = vector.extract_strided_slice %24 {offsets = [2, 0], sizes = [40, 128], strides = [1, 1]} : vector<44x128xf32> to vector<40x128xf32>
    %27 = vector.extract_strided_slice %24 {offsets = [4, 0], sizes = [40, 128], strides = [1, 1]} : vector<44x128xf32> to vector<40x128xf32>
    %28 = tpu.concatenate %25, %26, %27 in 1 : vector<40x128xf32>, vector<40x128xf32>, vector<40x128xf32> -> vector<40x384xf32>
    %c0_10 = arith.constant 0 : index
    %c0_11 = arith.constant 0 : index
    %29 = vector.load %arg2[%c0_10, %c0_11] : memref<384x128xf32, #tpu.memory_space<vmem>>, vector<384x128xf32>
    %cst_12 = arith.constant dense<0.000000e+00> : vector<40x128xf32>
    %30 = tpu.matmul %28, %29, %cst_12 {dimension_numbers = #tpu.dot_dimension_numbers<[1], [0], [0], [1], [0, 0, 1, 1], [], []>} : vector<40x384xf32>, vector<384x128xf32>, vector<40x128xf32> -> vector<40x128xf32>
    %31 = vector.broadcast %20 : vector<1x128xf32> to vector<40x128xf32>
    %32 = arith.addf %30, %31 : vector<40x128xf32>
    %cst_13 = arith.constant 0.000000e+00 : f32
    %33 = vector.broadcast %cst_13 : f32 to vector<40x128xf32>
    %34 = arith.maximumf %32, %33 : vector<40x128xf32>
    %cst_14 = arith.constant 0.000000e+00 : f32
    %35 = vector.shape_cast %19 : vector<40x1xi1> to vector<40x1xi1>
    %36 = vector.broadcast %35 : vector<40x1xi1> to vector<40x128xi1>
    %37 = vector.broadcast %cst_14 : f32 to vector<40x128xf32>
    %38 = arith.select %36, %34, %37 : vector<40x128xi1>, vector<40x128xf32>
    %cst_15 = arith.constant 0.000000e+00 : f32
    %39 = vector.broadcast %cst_15 : f32 to vector<4x128xf32>
    %40 = tpu.concatenate %39, %38 in 0 : vector<4x128xf32>, vector<40x128xf32> -> vector<44x128xf32>
    %41 = vector.extract_strided_slice %40 {offsets = [0, 0], sizes = [40, 128], strides = [1, 1]} : vector<44x128xf32> to vector<40x128xf32>
    %42 = vector.extract_strided_slice %40 {offsets = [2, 0], sizes = [40, 128], strides = [1, 1]} : vector<44x128xf32> to vector<40x128xf32>
    %43 = vector.extract_strided_slice %40 {offsets = [4, 0], sizes = [40, 128], strides = [1, 1]} : vector<44x128xf32> to vector<40x128xf32>
    %44 = tpu.concatenate %41, %42, %43 in 1 : vector<40x128xf32>, vector<40x128xf32>, vector<40x128xf32> -> vector<40x384xf32>
    %c0_16 = arith.constant 0 : index
    %c0_17 = arith.constant 0 : index
    %45 = vector.load %arg4[%c0_16, %c0_17] : memref<384x128xf32, #tpu.memory_space<vmem>>, vector<384x128xf32>
    %cst_18 = arith.constant dense<0.000000e+00> : vector<40x128xf32>
    %46 = tpu.matmul %44, %45, %cst_18 {dimension_numbers = #tpu.dot_dimension_numbers<[1], [0], [0], [1], [0, 0, 1, 1], [], []>} : vector<40x384xf32>, vector<384x128xf32>, vector<40x128xf32> -> vector<40x128xf32>
    %47 = vector.broadcast %21 : vector<1x128xf32> to vector<40x128xf32>
    %48 = arith.addf %46, %47 : vector<40x128xf32>
    %cst_19 = arith.constant 0.000000e+00 : f32
    %49 = vector.broadcast %cst_19 : f32 to vector<40x128xf32>
    %50 = arith.maximumf %48, %49 : vector<40x128xf32>
    %c0_20 = arith.constant 0 : index
    %c0_21 = arith.constant 0 : index
    %51 = vector.load %arg6[%c0_20, %c0_21] : memref<128x128xf32, #tpu.memory_space<vmem>>, vector<128x128xf32>
    %cst_22 = arith.constant dense<0.000000e+00> : vector<40x128xf32>
    %52 = tpu.matmul %0, %51, %cst_22 {dimension_numbers = #tpu.dot_dimension_numbers<[1], [0], [0], [1], [0, 0, 1, 1], [], []>} : vector<40x128xf32>, vector<128x128xf32>, vector<40x128xf32> -> vector<40x128xf32>
    %53 = vector.broadcast %22 : vector<1x128xf32> to vector<40x128xf32>
    %54 = arith.addf %52, %53 : vector<40x128xf32>
    %55 = arith.addf %50, %54 : vector<40x128xf32>
    %cst_23 = arith.constant 0.000000e+00 : f32
    %56 = vector.broadcast %cst_23 : f32 to vector<40x128xf32>
    %57 = arith.maximumf %55, %56 : vector<40x128xf32>
    %c0_24 = arith.constant 0 : index
    %c0_25 = arith.constant 0 : index
    %58 = vector.load %arg8[%c0_24, %c0_25] : memref<40x128xf32, #tpu.memory_space<vmem>>, vector<40x128xf32>
    tpu.vector_store %arg8[%c0_24, %c0_25], %57 {strides = array<i32>} : memref<40x128xf32, #tpu.memory_space<vmem>>, vector<40x128xf32>,
    return
  }
  func.func @transform_0(%arg0: i32) -> (i32, i32) {
    %c0_i32 = arith.constant 0 : i32
    %c0_i32_0 = arith.constant 0 : i32
    return %arg0, %c0_i32 : i32, i32
  }
  func.func @transform_1(%arg0: i32) -> (i32, i32) {
    %c0_i32 = arith.constant 0 : i32
    %c0_i32_0 = arith.constant 0 : i32
    %c0_i32_1 = arith.constant 0 : i32
    return %c0_i32, %c0_i32_0 : i32, i32
  }
  func.func @transform_2(%arg0: i32) -> (i32, i32) {
    %c0_i32 = arith.constant 0 : i32
    %c0_i32_0 = arith.constant 0 : i32
    %c0_i32_1 = arith.constant 0 : i32
    return %c0_i32, %c0_i32_0 : i32, i32
  }
  func.func @transform_3(%arg0: i32) -> (i32, i32) {
    %c0_i32 = arith.constant 0 : i32
    %c0_i32_0 = arith.constant 0 : i32
    %c0_i32_1 = arith.constant 0 : i32
    return %c0_i32, %c0_i32_0 : i32, i32
  }
  func.func @transform_4(%arg0: i32) -> (i32, i32) {
    %c0_i32 = arith.constant 0 : i32
    %c0_i32_0 = arith.constant 0 : i32
    %c0_i32_1 = arith.constant 0 : i32
    return %c0_i32, %c0_i32_0 : i32, i32
  }
  func.func @transform_5(%arg0: i32) -> (i32, i32) {
    %c0_i32 = arith.constant 0 : i32
    %c0_i32_0 = arith.constant 0 : i32
    %c0_i32_1 = arith.constant 0 : i32
    return %c0_i32, %c0_i32_0 : i32, i32
  }
  func.func @transform_6(%arg0: i32) -> (i32, i32) {
    %c0_i32 = arith.constant 0 : i32
    %c0_i32_0 = arith.constant 0 : i32
    %c0_i32_1 = arith.constant 0 : i32
    return %c0_i32, %c0_i32_0 : i32, i32
  }
  func.func @transform_7(%arg0: i32) -> (i32, i32) {
    %c0_i32 = arith.constant 0 : i32
    %c0_i32_0 = arith.constant 0 : i32
    return %arg0, %c0_i32 : i32, i32
  }
}

</mosaic_0001>

<llo_original>
// kernel: tpu_custom_call.1
$region0: #{tpu_custom_call.1}
  #allocation0 [shape = 'u32[]', space=smem, size = 0x4, offset = 0x4, fixed_abs, tag = 'smem constant byte address 0x4 - core index']
  #allocation1 [shape = 'u32[144,128]{1,0:T(1,128)}', space=vmem, size = 0x12000, scoped, tag = 'internal scratch']
  %s0 = inlined_call_operand.hbm [shape: f32[40,128], index: 0, kind: input, shape index: {}]
  %s1 = inlined_call_operand.hbm [shape: f32[384,128], index: 1, kind: input, shape index: {}]
  %s2 = inlined_call_operand.vmem [shape: f32[1,128], index: 2, kind: input, shape index: {}]
  %s3 = inlined_call_operand.hbm [shape: f32[384,128], index: 3, kind: input, shape index: {}]
  %s4 = inlined_call_operand.vmem [shape: f32[1,128], index: 4, kind: input, shape index: {}]
  %s5 = inlined_call_operand.hbm [shape: f32[128,128], index: 5, kind: input, shape index: {}]
  %s6 = inlined_call_operand.vmem [shape: f32[1,128], index: 6, kind: input, shape index: {}]
  %s7 = inlined_call_operand.hbm [shape: f32[40,128], index: 7, kind: output, shape index: {}]
  %s8 = sld [smem:[#allocation0]]
  $region54: #{tpu_custom_call.1} parent=0
    _
  %s10 = ssub.s32 1, %s8
  %s11 = scalar_select 0, %s10, %s8
  $region1: #{tpu_custom_call.1} parent=0
    #allocation2 [shape = 'u8[20480]{0}', space=vmem, size = 0x5000, scoped, tag = 'input window, operand 0, single buffered']
    #allocation3 [shape = 's32[1]{0}', space=sflag, size = 0x4, scoped, tag = 'scoped memory for tpu_custom_call.1']
    #allocation4 [shape = 's32[1]{0}', space=sflag, size = 0x4, scoped, tag = 'scoped memory for tpu_custom_call.1']
    #allocation5 [shape = 'u8[196608]{0}', space=vmem, size = 0x30000, scoped, tag = 'input window, operand 1, single buffered']
    #allocation6 [shape = 's32[1]{0}', space=sflag, size = 0x4, scoped, tag = 'scoped memory for tpu_custom_call.1']
    #allocation7 [shape = 'u8[196608]{0}', space=vmem, size = 0x30000, scoped, tag = 'input window, operand 3, single buffered']
    #allocation8 [shape = 'u8[65536]{0}', space=vmem, size = 0x10000, scoped, tag = 'input window, operand 5, single buffered']
    #allocation9 [shape = 's32[1]{0}', space=sflag, size = 0x4, scoped, tag = 'scoped memory for tpu_custom_call.1']
    #allocation10 [shape = 'u8[20480]{0}', space=vmem, size = 0x5000, scoped, tag = 'output window, operand 0, single buffered']
    %12 = vsyncpa [#allocation3], 0
    %13 = vsyncpa [#allocation6], 0
    %14 = vsyncpa [#allocation9], 0
    %15 = vsyncpa [#allocation4], 0
    // Predicated region
    $region2: #{tpu_custom_call.1} parent=1 // pred_check
      _
    $region3: #{tpu_custom_call.1} parent=1 // pred_check_branch
      %17 = sbr.rel (0) target = $region5
    $region4: #{tpu_custom_call.1} parent=1 // pred_region
      %s19 = ssub.s32 640, 640
      %20 = vsyncadd [#allocation3], %s19
      %s21 = sshll.u32 [#allocation2], 4
      %s22 = int_to_ptr.vmem [resolvable:$true] %s21
      %27 = dma.hbm_to_vmem [thread:$0]  %s0, 640, %s22, [#allocation3], 128, 128, 8
    $region5: #{tpu_custom_call.1} parent=1 // pred_fallthru
      _
    // Predicated region
    $region6: #{tpu_custom_call.1} parent=1 // pred_check
      _
    $region7: #{tpu_custom_call.1} parent=1 // pred_check_branch
      %29 = sbr.rel (0) target = $region9
    $region8: #{tpu_custom_call.1} parent=1 // pred_region
      %s31 = ssub.s32 6144, 6144
      %32 = vsyncadd [#allocation6], %s31
      %s33 = sshll.u32 [#allocation5], 4
      %s34 = int_to_ptr.vmem [resolvable:$true] %s33
      %39 = dma.hbm_to_vmem [thread:$0]  %s1, 6144, %s34, [#allocation6], 128, 128, 8
    $region9: #{tpu_custom_call.1} parent=1 // pred_fallthru
      _
    // Predicated region
    $region10: #{tpu_custom_call.1} parent=1 // pred_check
      _
    $region11: #{tpu_custom_call.1} parent=1 // pred_check_branch
      %41 = sbr.rel (0) target = $region13
    $region12: #{tpu_custom_call.1} parent=1 // pred_region
      _
    $region13: #{tpu_custom_call.1} parent=1 // pred_fallthru
      _
    // Predicated region
    $region14: #{tpu_custom_call.1} parent=1 // pred_check
      _
    $region15: #{tpu_custom_call.1} parent=1 // pred_check_branch
      %43 = sbr.rel (0) target = $region17
    $region16: #{tpu_custom_call.1} parent=1 // pred_region
      %s45 = ssub.s32 6144, 6144
      %46 = vsyncadd [#allocation6], %s45
      %s47 = sshll.u32 [#allocation7], 4
      %s48 = int_to_ptr.vmem [resolvable:$true] %s47
      %53 = dma.hbm_to_vmem [thread:$0]  %s3, 6144, %s48, [#allocation6], 128, 128, 8
    $region17: #{tpu_custom_call.1} parent=1 // pred_fallthru
      _
    // Predicated region
    $region18: #{tpu_custom_call.1} parent=1 // pred_check
      _
    $region19: #{tpu_custom_call.1} parent=1 // pred_check_branch
      %55 = sbr.rel (0) target = $region21
    $region20: #{tpu_custom_call.1} parent=1 // pred_region
      _
    $region21: #{tpu_custom_call.1} parent=1 // pred_fallthru
      _
    // Predicated region
    $region22: #{tpu_custom_call.1} parent=1 // pred_check
      _
    $region23: #{tpu_custom_call.1} parent=1 // pred_check_branch
      %57 = sbr.rel (0) target = $region25
    $region24: #{tpu_custom_call.1} parent=1 // pred_region
      %s59 = ssub.s32 2048, 2048
      %60 = vsyncadd [#allocation9], %s59
      %s61 = sshll.u32 [#allocation8], 4
      %s62 = int_to_ptr.vmem [resolvable:$true] %s61
      %67 = dma.hbm_to_vmem [thread:$0]  %s5, 2048, %s62, [#allocation9], 128, 128, 8
    $region25: #{tpu_custom_call.1} parent=1 // pred_fallthru
      _
    // Predicated region
    $region26: #{tpu_custom_call.1} parent=1 // pred_check
      _
    $region27: #{tpu_custom_call.1} parent=1 // pred_check_branch
      %69 = sbr.rel (0) target = $region29
    $region28: #{tpu_custom_call.1} parent=1 // pred_region
      _
    $region29: #{tpu_custom_call.1} parent=1 // pred_fallthru
      _
    // Predicated region
    $region30: #{tpu_custom_call.1} parent=1 // pred_check
      _
    $region31: #{tpu_custom_call.1} parent=1 // pred_check_branch
      %71 = sbr.rel (0) target = $region33
    $region32: #{tpu_custom_call.1} parent=1 // pred_region
      %72 = dma.done [#allocation3], 640
    $region33: #{tpu_custom_call.1} parent=1 // pred_fallthru
      _
    // Predicated region
    $region34: #{tpu_custom_call.1} parent=1 // pred_check
      _
    $region35: #{tpu_custom_call.1} parent=1 // pred_check_branch
      %74 = sbr.rel (0) target = $region37
    $region36: #{tpu_custom_call.1} parent=1 // pred_region
      %75 = dma.done [#allocation6], 6144
    $region37: #{tpu_custom_call.1} parent=1 // pred_fallthru
      _
    // Predicated region
    $region38: #{tpu_custom_call.1} parent=1 // pred_check
      _
    $region39: #{tpu_custom_call.1} parent=1 // pred_check_branch
      %77 = sbr.rel (0) target = $region41
    $region40: #{tpu_custom_call.1} parent=1 // pred_region
      %78 = dma.done [#allocation6], 6144
    $region41: #{tpu_custom_call.1} parent=1 // pred_fallthru
      _
    // Predicated region
    $region42: #{tpu_custom_call.1} parent=1 // pred_check
      _
    $region43: #{tpu_custom_call.1} parent=1 // pred_check_branch
      %80 = sbr.rel (0) target = $region45
    $region44: #{tpu_custom_call.1} parent=1 // pred_region
      %81 = dma.done [#allocation9], 2048
    $region45: #{tpu_custom_call.1} parent=1 // pred_fallthru
      _
    %v82 = vld [vmem:[#allocation2] sm:$0xff]
    %v83 = vld [vmem:[#allocation2 + $0x8] sm:$0xff]
    %v84 = vld [vmem:[#allocation2 + $0x10] sm:$0xff]
    %v85 = vld [vmem:[#allocation2 + $0x18] sm:$0xff]
    %v86 = vld [vmem:[#allocation2 + $0x20] sm:$0xff]
    %v87 = vlaneseq
    %v88 = vshrl.u32 %v87, 7
    %v89 = vadd.s32 %v88, 8
    %v90 = vadd.s32 %v88, 16
    %v91 = vadd.s32 %v88, 24
    %v92 = vadd.s32 %v88, 32
    %vm93 = vcmp.lt.s32.totalorder %v88, 0
    %v94 = vsub.s32 0, %v88
    %v95 = vsel %vm93, %v94, %v88
    %v96 = vmul.u32.u64.compose %v95, 3435973837
    %v97 = vextract.low.u32 %v96
    %v98 = vextract.high.u32 %v96
    %v99 = vshrl.u32 %v98, 4
    %v100 = vmul.u32 %v99, 20
    %v101 = vsub.s32 %v95, %v100
    %v102 = vsub.s32 0, %v101
    %v103 = vsel %vm93, %v102, %v101
    %vm104 = vcmp.lt.s32.totalorder %v89, 0
    %v105 = vsub.s32 0, %v89
    %v106 = vsel %vm104, %v105, %v89
    %v107 = vmul.u32.u64.compose %v106, 3435973837
    %v108 = vextract.low.u32 %v107
    %v109 = vextract.high.u32 %v107
    %v110 = vshrl.u32 %v109, 4
    %v111 = vmul.u32 %v110, 20
    %v112 = vsub.s32 %v106, %v111
    %v113 = vsub.s32 0, %v112
    %v114 = vsel %vm104, %v113, %v112
    %vm115 = vcmp.lt.s32.totalorder %v90, 0
    %v116 = vsub.s32 0, %v90
    %v117 = vsel %vm115, %v116, %v90
    %v118 = vmul.u32.u64.compose %v117, 3435973837
    %v119 = vextract.low.u32 %v118
    %v120 = vextract.high.u32 %v118
    %v121 = vshrl.u32 %v120, 4
    %v122 = vmul.u32 %v121, 20
    %v123 = vsub.s32 %v117, %v122
    %v124 = vsub.s32 0, %v123
    %v125 = vsel %vm115, %v124, %v123
    %vm126 = vcmp.lt.s32.totalorder %v91, 0
    %v127 = vsub.s32 0, %v91
    %v128 = vsel %vm126, %v127, %v91
    %v129 = vmul.u32.u64.compose %v128, 3435973837
    %v130 = vextract.low.u32 %v129
    %v131 = vextract.high.u32 %v129
    %v132 = vshrl.u32 %v131, 4
    %v133 = vmul.u32 %v132, 20
    %v134 = vsub.s32 %v128, %v133
    %v135 = vsub.s32 0, %v134
    %v136 = vsel %vm126, %v135, %v134
    %vm137 = vcmp.lt.s32.totalorder %v92, 0
    %v138 = vsub.s32 0, %v92
    %v139 = vsel %vm137, %v138, %v92
    %v140 = vmul.u32.u64.compose %v139, 3435973837
    %v141 = vextract.low.u32 %v140
    %v142 = vextract.high.u32 %v140
    %v143 = vshrl.u32 %v142, 4
    %v144 = vmul.u32 %v143, 20
    %v145 = vsub.s32 %v139, %v144
    %v146 = vsub.s32 0, %v145
    %v147 = vsel %vm137, %v146, %v145
    %vm148 = vcmp.ne.s32.totalorder %v103, 0
    %vm149 = vcmp.ne.s32.totalorder %v114, 0
    %vm150 = vcmp.ne.s32.totalorder %v125, 0
    %vm151 = vcmp.ne.s32.totalorder %v136, 0
    %vm152 = vcmp.ne.s32.totalorder %v147, 0
    %vm153 = vcmp.lt.s32.totalorder %v103, 0
    %vm154 = vcmp.lt.s32.totalorder %v114, 0
    %vm155 = vcmp.lt.s32.totalorder %v125, 0
    %vm156 = vcmp.lt.s32.totalorder %v136, 0
    %vm157 = vcmp.lt.s32.totalorder %v147, 0
    %vm158 = vmand %vm153, %vm148
    %vm159 = vmand %vm154, %vm149
    %vm160 = vmand %vm155, %vm150
    %vm161 = vmand %vm156, %vm151
    %vm162 = vmand %vm157, %vm152
    %v163 = vadd.s32 %v103, 20
    %v164 = vadd.s32 %v114, 20
    %v165 = vadd.s32 %v125, 20
    %v166 = vadd.s32 %v136, 20
    %v167 = vadd.s32 %v147, 20
    %v168 = vsel %vm158, %v163, %v103
    %v169 = vsel %vm159, %v164, %v114
    %v170 = vsel %vm160, %v165, %v125
    %v171 = vsel %vm161, %v166, %v136
    %v172 = vsel %vm162, %v167, %v147
    %vm173 = vcmp.ge.s32.totalorder %v168, 4
    %vm174 = vcmp.ge.s32.totalorder %v169, 4
    %vm175 = vcmp.ge.s32.totalorder %v170, 4
    %vm176 = vcmp.ge.s32.totalorder %v171, 4
    %vm177 = vcmp.ge.s32.totalorder %v172, 4
    %v178 = vld [vmem:[%s2] sm:$0x1]
    %v179 = vld [vmem:[%s4] sm:$0x1]
    %v180 = vld [vmem:[%s6] sm:$0x1]
    %vm186 = vcmask 1043456
    %v187 = vrot.slane %v82, 4
    %v188 = vrot.slane %v83, 4
    %v189 = vsel %vm186, %v187, %v188
    %v190 = vrot.slane %v84, 4
    %v191 = vsel %vm186, %v188, %v190
    %v192 = vrot.slane %v85, 4
    %v193 = vsel %vm186, %v190, %v192
    %v194 = vrot.slane %v86, 4
    %v195 = vsel %vm186, %v192, %v194
    %v201 = vsel %vm186, 0.0, %v187
    %vm203 = vcmask 1045504
    %v204 = vrot.slane %v201, 2
    %v205 = vrot.slane %v189, 2
    %v206 = vsel %vm203, %v204, %v205
    %v207 = vrot.slane %v191, 2
    %v208 = vsel %vm203, %v205, %v207
    %v209 = vrot.slane %v193, 2
    %v210 = vsel %vm203, %v207, %v209
    %v211 = vrot.slane %v195, 2
    %v212 = vsel %vm203, %v209, %v211
    %v213 = vrot.slane %v194, 2
    %v214 = vsel %vm203, %v211, %v213
    %v220 = vrot.slane %v201, 4
    %v221 = vrot.slane %v189, 4
    %v222 = vsel %vm186, %v220, %v221
    %v223 = vrot.slane %v191, 4
    %v224 = vsel %vm186, %v221, %v223
    %v225 = vrot.slane %v193, 4
    %v226 = vsel %vm186, %v223, %v225
    %v227 = vrot.slane %v195, 4
    %v228 = vsel %vm186, %v225, %v227
    %v229 = vrot.slane %v194, 4
    %v230 = vsel %vm186, %v227, %v229
    %v236 = vld [vmem:[#allocation5] sm:$0xff]
    %v237 = vld [vmem:[#allocation5 + $0x8] sm:$0xff]
    %v238 = vld [vmem:[#allocation5 + $0x10] sm:$0xff]
    %v239 = vld [vmem:[#allocation5 + $0x18] sm:$0xff]
    %v240 = vld [vmem:[#allocation5 + $0x20] sm:$0xff]
    %v241 = vld [vmem:[#allocation5 + $0x28] sm:$0xff]
    %v242 = vld [vmem:[#allocation5 + $0x30] sm:$0xff]
    %v243 = vld [vmem:[#allocation5 + $0x38] sm:$0xff]
    %v244 = vld [vmem:[#allocation5 + $0x40] sm:$0xff]
    %v245 = vld [vmem:[#allocation5 + $0x48] sm:$0xff]
    %v246 = vld [vmem:[#allocation5 + $0x50] sm:$0xff]
    %v247 = vld [vmem:[#allocation5 + $0x58] sm:$0xff]
    %v248 = vld [vmem:[#allocation5 + $0x60] sm:$0xff]
    %v249 = vld [vmem:[#allocation5 + $0x68] sm:$0xff]
    %v250 = vld [vmem:[#allocation5 + $0x70] sm:$0xff]
    %v251 = vld [vmem:[#allocation5 + $0x78] sm:$0xff]
    %v252 = vld [vmem:[#allocation5 + $0x80] sm:$0xff]
    %v253 = vld [vmem:[#allocation5 + $0x88] sm:$0xff]
    %v254 = vld [vmem:[#allocation5 + $0x90] sm:$0xff]
    %v255 = vld [vmem:[#allocation5 + $0x98] sm:$0xff]
    %v256 = vld [vmem:[#allocation5 + $0xa0] sm:$0xff]
    %v257 = vld [vmem:[#allocation5 + $0xa8] sm:$0xff]
    %v258 = vld [vmem:[#allocation5 + $0xb0] sm:$0xff]
    %v259 = vld [vmem:[#allocation5 + $0xb8] sm:$0xff]
    %v260 = vld [vmem:[#allocation5 + $0xc0] sm:$0xff]
    %v261 = vld [vmem:[#allocation5 + $0xc8] sm:$0xff]
    %v262 = vld [vmem:[#allocation5 + $0xd0] sm:$0xff]
    %v263 = vld [vmem:[#allocation5 + $0xd8] sm:$0xff]
    %v264 = vld [vmem:[#allocation5 + $0xe0] sm:$0xff]
    %v265 = vld [vmem:[#allocation5 + $0xe8] sm:$0xff]
    %v266 = vld [vmem:[#allocation5 + $0xf0] sm:$0xff]
    %v267 = vld [vmem:[#allocation5 + $0xf8] sm:$0xff]
    %v268 = vld [vmem:[#allocation5 + $0x100] sm:$0xff]
    %v269 = vld [vmem:[#allocation5 + $0x108] sm:$0xff]
    %v270 = vld [vmem:[#allocation5 + $0x110] sm:$0xff]
    %v271 = vld [vmem:[#allocation5 + $0x118] sm:$0xff]
    %v272 = vld [vmem:[#allocation5 + $0x120] sm:$0xff]
    %v273 = vld [vmem:[#allocation5 + $0x128] sm:$0xff]
    %v274 = vld [vmem:[#allocation5 + $0x130] sm:$0xff]
    %v275 = vld [vmem:[#allocation5 + $0x138] sm:$0xff]
    %v276 = vld [vmem:[#allocation5 + $0x140] sm:$0xff]
    %v277 = vld [vmem:[#allocation5 + $0x148] sm:$0xff]
    %v278 = vld [vmem:[#allocation5 + $0x150] sm:$0xff]
    %v279 = vld [vmem:[#allocation5 + $0x158] sm:$0xff]
    %v280 = vld [vmem:[#allocation5 + $0x160] sm:$0xff]
    %v281 = vld [vmem:[#allocation5 + $0x168] sm:$0xff]
    %v282 = vld [vmem:[#allocation5 + $0x170] sm:$0xff]
    %v283 = vld [vmem:[#allocation5 + $0x178] sm:$0xff]
    %v285 = vlaneseq
    %v286 = vshrl.u32 %v285, 7
    %v287 = vsub.s32 0, %v286
    %v288 = vrot.slane %v178, %v287
    %290 = vmatprep.subr.mxu0 0.0
    %291 = vmatpush1.msra.mxu0 %v236
    %292 = vmatprep.subr.mxu0 0.0
    %293 = vmatpush1.msra.mxu0 %v237
    %294 = vmatprep.subr.mxu0 0.0
    %295 = vmatpush1.msra.mxu0 %v238
    %296 = vmatprep.subr.mxu0 0.0
    %297 = vmatpush1.msra.mxu0 %v239
    %298 = vmatprep.subr.mxu0 0.0
    %299 = vmatpush1.msra.mxu0 %v240
    %300 = vmatprep.subr.mxu0 0.0
    %301 = vmatpush1.msra.mxu0 %v241
    %302 = vmatprep.subr.mxu0 0.0
    %303 = vmatpush1.msra.mxu0 %v242
    %304 = vmatprep.subr.mxu0 0.0
    %305 = vmatpush1.msra.mxu0 %v243
    %306 = vmatprep.subr.mxu0 0.0
    %307 = vmatpush1.msra.mxu0 %v244
    %308 = vmatprep.subr.mxu0 0.0
    %309 = vmatpush1.msra.mxu0 %v245
    %310 = vmatprep.subr.mxu0 0.0
    %311 = vmatpush1.msra.mxu0 %v246
    %312 = vmatprep.subr.mxu0 0.0
    %313 = vmatpush1.msra.mxu0 %v247
    %314 = vmatprep.subr.mxu0 0.0
    %315 = vmatpush1.msra.mxu0 %v248
    %316 = vmatprep.subr.mxu0 0.0
    %317 = vmatpush1.msra.mxu0 %v249
    %318 = vmatprep.subr.mxu0 0.0
    %319 = vmatpush1.msra.mxu0 %v250
    %320 = vmatprep.subr.mxu0 0.0
    %321 = vmatpush1.msra.mxu0 %v251
    %322 = vmatprep.subr.mxu0 0.0
    %323 = vmatpush1.msra.mxu0 %v252
    %324 = vmatprep.subr.mxu0 0.0
    %325 = vmatpush1.msra.mxu0 %v253
    %326 = vmatprep.subr.mxu0 0.0
    %327 = vmatpush1.msra.mxu0 %v254
    %328 = vmatprep.subr.mxu0 0.0
    %329 = vmatpush1.msra.mxu0 %v255
    %330 = vmatprep.subr.mxu0 0.0
    %331 = vmatpush1.msra.mxu0 %v256
    %332 = vmatprep.subr.mxu0 0.0
    %333 = vmatpush1.msra.mxu0 %v257
    %334 = vmatprep.subr.mxu0 0.0
    %335 = vmatpush1.msra.mxu0 %v258
    %336 = vmatprep.subr.mxu0 0.0
    %337 = vmatpush1.msra.mxu0 %v259
    %338 = vmatprep.subr.mxu0 0.0
    %339 = vmatpush1.msra.mxu0 %v260
    %340 = vmatprep.subr.mxu0 0.0
    %341 = vmatpush1.msra.mxu0 %v261
    %342 = vmatprep.subr.mxu0 0.0
    %343 = vmatpush1.msra.mxu0 %v262
    %344 = vmatprep.subr.mxu0 0.0
    %345 = vmatpush1.msra.mxu0 %v263
    %346 = vmatprep.subr.mxu0 0.0
    %347 = vmatpush1.msra.mxu0 %v264
    %348 = vmatprep.subr.mxu0 0.0
    %349 = vmatpush1.msra.mxu0 %v265
    %350 = vmatprep.subr.mxu0 0.0
    %351 = vmatpush1.msra.mxu0 %v266
    %352 = vmatprep.subr.mxu0 0.0
    %353 = vmatpush1.msra.mxu0 %v267
    %354 = vmatprep.mubr.f32.mxu0 %v206
    %355 = vmatmul.mubr.f32.gmra.mrb[0].mxu0 %v201
    %v356 = vpop.f32.mrb[0].mxu0
    %v357 = vadd.f32 %v288, %v356
    %v358 = vpop.f32.mrb[0].mxu0
    %359 = vmatprep.mubr.f32.mxu0 %v208
    %360 = vmatmul.mubr.f32.gmra.mrb[0].mxu0 %v189
    %v361 = vpop.f32.mrb[0].mxu0
    %v362 = vadd.f32 %v288, %v361
    %v363 = vpop.f32.mrb[0].mxu0
    %364 = vmatprep.mubr.f32.mxu0 %v210
    %365 = vmatmul.mubr.f32.gmra.mrb[0].mxu0 %v191
    %v366 = vpop.f32.mrb[0].mxu0
    %v367 = vadd.f32 %v288, %v366
    %v368 = vpop.f32.mrb[0].mxu0
    %369 = vmatprep.mubr.f32.mxu0 %v212
    %370 = vmatmul.mubr.f32.gmra.mrb[0].mxu0 %v193
    %v371 = vpop.f32.mrb[0].mxu0
    %v372 = vadd.f32 %v288, %v371
    %v373 = vpop.f32.mrb[0].mxu0
    %374 = vmatprep.mubr.f32.mxu0 %v214
    %375 = vmatmul.mubr.f32.gmra.mrb[0].mxu0 %v195
    %v376 = vpop.f32.mrb[0].mxu0
    %v377 = vadd.f32 %v288, %v376
    %v378 = vpop.f32.mrb[0].mxu0
    %379 = vdwg.mxu0
    %380 = vmatprep.subr.mxu0 0.0
    %381 = vmatpush1.msra.mxu0 %v268
    %382 = vmatprep.subr.mxu0 0.0
    %383 = vmatpush1.msra.mxu0 %v269
    %384 = vmatprep.subr.mxu0 0.0
    %385 = vmatpush1.msra.mxu0 %v270
    %386 = vmatprep.subr.mxu0 0.0
    %387 = vmatpush1.msra.mxu0 %v271
    %388 = vmatprep.subr.mxu0 0.0
    %389 = vmatpush1.msra.mxu0 %v272
    %390 = vmatprep.subr.mxu0 0.0
    %391 = vmatpush1.msra.mxu0 %v273
    %392 = vmatprep.subr.mxu0 0.0
    %393 = vmatpush1.msra.mxu0 %v274
    %394 = vmatprep.subr.mxu0 0.0
    %395 = vmatpush1.msra.mxu0 %v275
    %396 = vmatprep.subr.mxu0 0.0
    %397 = vmatpush1.msra.mxu0 %v276
    %398 = vmatprep.subr.mxu0 0.0
    %399 = vmatpush1.msra.mxu0 %v277
    %400 = vmatprep.subr.mxu0 0.0
    %401 = vmatpush1.msra.mxu0 %v278
    %402 = vmatprep.subr.mxu0 0.0
    %403 = vmatpush1.msra.mxu0 %v279
    %404 = vmatprep.subr.mxu0 0.0
    %405 = vmatpush1.msra.mxu0 %v280
    %406 = vmatprep.subr.mxu0 0.0
    %407 = vmatpush1.msra.mxu0 %v281
    %408 = vmatprep.subr.mxu0 0.0
    %409 = vmatpush1.msra.mxu0 %v282
    %410 = vmatprep.subr.mxu0 0.0
    %411 = vmatpush1.msra.mxu0 %v283
    %412 = vmatprep.subr.mxu0 0.0
    %413 = vmatpush1.msra.mxu0 0.0
    %414 = vmatprep.subr.mxu0 0.0
    %415 = vmatpush1.msra.mxu0 0.0
    %416 = vmatprep.subr.mxu0 0.0
    %417 = vmatpush1.msra.mxu0 0.0
    %418 = vmatprep.subr.mxu0 0.0
    %419 = vmatpush1.msra.mxu0 0.0
    %420 = vmatprep.subr.mxu0 0.0
    %421 = vmatpush1.msra.mxu0 0.0
    %422 = vmatprep.subr.mxu0 0.0
    %423 = vmatpush1.msra.mxu0 0.0
    %424 = vmatprep.subr.mxu0 0.0
    %425 = vmatpush1.msra.mxu0 0.0
    %426 = vmatprep.subr.mxu0 0.0
    %427 = vmatpush1.msra.mxu0 0.0
    %428 = vmatprep.subr.mxu0 0.0
    %429 = vmatpush1.msra.mxu0 0.0
    %430 = vmatprep.subr.mxu0 0.0
    %431 = vmatpush1.msra.mxu0 0.0
    %432 = vmatprep.subr.mxu0 0.0
    %433 = vmatpush1.msra.mxu0 0.0
    %434 = vmatprep.subr.mxu0 0.0
    %435 = vmatpush1.msra.mxu0 0.0
    %436 = vmatprep.subr.mxu0 0.0
    %437 = vmatpush1.msra.mxu0 0.0
    %438 = vmatprep.subr.mxu0 0.0
    %439 = vmatpush1.msra.mxu0 0.0
    %440 = vmatprep.subr.mxu0 0.0
    %441 = vmatpush1.msra.mxu0 0.0
    %442 = vmatprep.subr.mxu0 0.0
    %443 = vmatpush1.msra.mxu0 0.0
    %444 = vmatprep.mubr.f32.mxu0 0.0
    %445 = vmatmul.mubr.f32.gmra.mrb[0].mxu0 %v222
    %v446 = vpop.f32.mrb[0].mxu0
    %v447 = vadd.f32 %v357, %v446
    %v448 = vpop.f32.mrb[0].mxu0
    %449 = vmatprep.mubr.f32.mxu0 0.0
    %450 = vmatmul.mubr.f32.gmra.mrb[0].mxu0 %v224
    %v451 = vpop.f32.mrb[0].mxu0
    %v452 = vadd.f32 %v362, %v451
    %v453 = vpop.f32.mrb[0].mxu0
    %454 = vmatprep.mubr.f32.mxu0 0.0
    %455 = vmatmul.mubr.f32.gmra.mrb[0].mxu0 %v226
    %v456 = vpop.f32.mrb[0].mxu0
    %v457 = vadd.f32 %v367, %v456
    %v458 = vpop.f32.mrb[0].mxu0
    %459 = vmatprep.mubr.f32.mxu0 0.0
    %460 = vmatmul.mubr.f32.gmra.mrb[0].mxu0 %v228
    %v461 = vpop.f32.mrb[0].mxu0
    %v462 = vadd.f32 %v372, %v461
    %v463 = vpop.f32.mrb[0].mxu0
    %464 = vmatprep.mubr.f32.mxu0 0.0
    %465 = vmatmul.mubr.f32.gmra.mrb[0].mxu0 %v230
    %v466 = vpop.f32.mrb[0].mxu0
    %v467 = vadd.f32 %v377, %v466
    %v468 = vpop.f32.mrb[0].mxu0
    %469 = vdwg.mxu0
    %v470 = vmax.f32 %v447, 0.0
    %v471 = vmax.f32 %v452, 0.0
    %v472 = vmax.f32 %v457, 0.0
    %v473 = vmax.f32 %v462, 0.0
    %v474 = vmax.f32 %v467, 0.0
    %v475 = vsel %vm173, 1, 0
    %v476 = vsel %vm174, 1, 0
    %v477 = vsel %vm175, 1, 0
    %v478 = vsel %vm176, 1, 0
    %v479 = vsel %vm177, 1, 0
    %vm480 = vcmp.eq.s32.totalorder %v475, 1
    %vm481 = vcmp.eq.s32.totalorder %v476, 1
    %vm482 = vcmp.eq.s32.totalorder %v477, 1
    %vm483 = vcmp.eq.s32.totalorder %v478, 1
    %vm484 = vcmp.eq.s32.totalorder %v479, 1
    %v485 = vsel %vm480, %v470, 0.0
    %v486 = vsel %vm481, %v471, 0.0
    %v487 = vsel %vm482, %v472, 0.0
    %v488 = vsel %vm483, %v473, 0.0
    %v489 = vsel %vm484, %v474, 0.0
    %v495 = vrot.slane %v485, 4
    %v496 = vrot.slane %v486, 4
    %v497 = vsel %vm186, %v495, %v496
    %v498 = vrot.slane %v487, 4
    %v499 = vsel %vm186, %v496, %v498
    %v500 = vrot.slane %v488, 4
    %v501 = vsel %vm186, %v498, %v500
    %v502 = vrot.slane %v489, 4
    %v503 = vsel %vm186, %v500, %v502
    %v509 = vsel %vm186, 0.0, %v495
    %v511 = vrot.slane %v509, 2
    %v512 = vrot.slane %v497, 2
    %v513 = vsel %vm203, %v511, %v512
    %v514 = vrot.slane %v499, 2
    %v515 = vsel %vm203, %v512, %v514
    %v516 = vrot.slane %v501, 2
    %v517 = vsel %vm203, %v514, %v516
    %v518 = vrot.slane %v503, 2
    %v519 = vsel %vm203, %v516, %v518
    %v520 = vrot.slane %v502, 2
    %v521 = vsel %vm203, %v518, %v520
    %v527 = vrot.slane %v509, 4
    %v528 = vrot.slane %v497, 4
    %v529 = vsel %vm186, %v527, %v528
    %v530 = vrot.slane %v499, 4
    %v531 = vsel %vm186, %v528, %v530
    %v532 = vrot.slane %v501, 4
    %v533 = vsel %vm186, %v530, %v532
    %v534 = vrot.slane %v503, 4
    %v535 = vsel %vm186, %v532, %v534
    %v536 = vrot.slane %v502, 4
    %v537 = vsel %vm186, %v534, %v536
    %v543 = vld [vmem:[#allocation7] sm:$0xff]
    %v544 = vld [vmem:[#allocation7 + $0x8] sm:$0xff]
    %v545 = vld [vmem:[#allocation7 + $0x10] sm:$0xff]
    %v546 = vld [vmem:[#allocation7 + $0x18] sm:$0xff]
    %v547 = vld [vmem:[#allocation7 + $0x20] sm:$0xff]
    %v548 = vld [vmem:[#allocation7 + $0x28] sm:$0xff]
    %v549 = vld [vmem:[#allocation7 + $0x30] sm:$0xff]
    %v550 = vld [vmem:[#allocation7 + $0x38] sm:$0xff]
    %v551 = vld [vmem:[#allocation7 + $0x40] sm:$0xff]
    %v552 = vld [vmem:[#allocation7 + $0x48] sm:$0xff]
    %v553 = vld [vmem:[#allocation7 + $0x50] sm:$0xff]
    %v554 = vld [vmem:[#allocation7 + $0x58] sm:$0xff]
    %v555 = vld [vmem:[#allocation7 + $0x60] sm:$0xff]
    %v556 = vld [vmem:[#allocation7 + $0x68] sm:$0xff]
    %v557 = vld [vmem:[#allocation7 + $0x70] sm:$0xff]
    %v558 = vld [vmem:[#allocation7 + $0x78] sm:$0xff]
    %v559 = vld [vmem:[#allocation7 + $0x80] sm:$0xff]
    %v560 = vld [vmem:[#allocation7 + $0x88] sm:$0xff]
    %v561 = vld [vmem:[#allocation7 + $0x90] sm:$0xff]
    %v562 = vld [vmem:[#allocation7 + $0x98] sm:$0xff]
    %v563 = vld [vmem:[#allocation7 + $0xa0] sm:$0xff]
    %v564 = vld [vmem:[#allocation7 + $0xa8] sm:$0xff]
    %v565 = vld [vmem:[#allocation7 + $0xb0] sm:$0xff]
    %v566 = vld [vmem:[#allocation7 + $0xb8] sm:$0xff]
    %v567 = vld [vmem:[#allocation7 + $0xc0] sm:$0xff]
    %v568 = vld [vmem:[#allocation7 + $0xc8] sm:$0xff]
    %v569 = vld [vmem:[#allocation7 + $0xd0] sm:$0xff]
    %v570 = vld [vmem:[#allocation7 + $0xd8] sm:$0xff]
    %v571 = vld [vmem:[#allocation7 + $0xe0] sm:$0xff]
    %v572 = vld [vmem:[#allocation7 + $0xe8] sm:$0xff]
    %v573 = vld [vmem:[#allocation7 + $0xf0] sm:$0xff]
    %v574 = vld [vmem:[#allocation7 + $0xf8] sm:$0xff]
    %v575 = vld [vmem:[#allocation7 + $0x100] sm:$0xff]
    %v576 = vld [vmem:[#allocation7 + $0x108] sm:$0xff]
    %v577 = vld [vmem:[#allocation7 + $0x110] sm:$0xff]
    %v578 = vld [vmem:[#allocation7 + $0x118] sm:$0xff]
    %v579 = vld [vmem:[#allocation7 + $0x120] sm:$0xff]
    %v580 = vld [vmem:[#allocation7 + $0x128] sm:$0xff]
    %v581 = vld [vmem:[#allocation7 + $0x130] sm:$0xff]
    %v582 = vld [vmem:[#allocation7 + $0x138] sm:$0xff]
    %v583 = vld [vmem:[#allocation7 + $0x140] sm:$0xff]
    %v584 = vld [vmem:[#allocation7 + $0x148] sm:$0xff]
    %v585 = vld [vmem:[#allocation7 + $0x150] sm:$0xff]
    %v586 = vld [vmem:[#allocation7 + $0x158] sm:$0xff]
    %v587 = vld [vmem:[#allocation7 + $0x160] sm:$0xff]
    %v588 = vld [vmem:[#allocation7 + $0x168] sm:$0xff]
    %v589 = vld [vmem:[#allocation7 + $0x170] sm:$0xff]
    %v590 = vld [vmem:[#allocation7 + $0x178] sm:$0xff]
    %v592 = vlaneseq
    %v593 = vshrl.u32 %v592, 7
    %v594 = vsub.s32 0, %v593
    %v595 = vrot.slane %v179, %v594
    %597 = vmatprep.subr.mxu0 0.0
    %598 = vmatpush1.msra.mxu0 %v543
    %599 = vmatprep.subr.mxu0 0.0
    %600 = vmatpush1.msra.mxu0 %v544
    %601 = vmatprep.subr.mxu0 0.0
    %602 = vmatpush1.msra.mxu0 %v545
    %603 = vmatprep.subr.mxu0 0.0
    %604 = vmatpush1.msra.mxu0 %v546
    %605 = vmatprep.subr.mxu0 0.0
    %606 = vmatpush1.msra.mxu0 %v547
    %607 = vmatprep.subr.mxu0 0.0
    %608 = vmatpush1.msra.mxu0 %v548
    %609 = vmatprep.subr.mxu0 0.0
    %610 = vmatpush1.msra.mxu0 %v549
    %611 = vmatprep.subr.mxu0 0.0
    %612 = vmatpush1.msra.mxu0 %v550
    %613 = vmatprep.subr.mxu0 0.0
    %614 = vmatpush1.msra.mxu0 %v551
    %615 = vmatprep.subr.mxu0 0.0
    %616 = vmatpush1.msra.mxu0 %v552
    %617 = vmatprep.subr.mxu0 0.0
    %618 = vmatpush1.msra.mxu0 %v553
    %619 = vmatprep.subr.mxu0 0.0
    %620 = vmatpush1.msra.mxu0 %v554
    %621 = vmatprep.subr.mxu0 0.0
    %622 = vmatpush1.msra.mxu0 %v555
    %623 = vmatprep.subr.mxu0 0.0
    %624 = vmatpush1.msra.mxu0 %v556
    %625 = vmatprep.subr.mxu0 0.0
    %626 = vmatpush1.msra.mxu0 %v557
    %627 = vmatprep.subr.mxu0 0.0
    %628 = vmatpush1.msra.mxu0 %v558
    %629 = vmatprep.subr.mxu0 0.0
    %630 = vmatpush1.msra.mxu0 %v559
    %631 = vmatprep.subr.mxu0 0.0
    %632 = vmatpush1.msra.mxu0 %v560
    %633 = vmatprep.subr.mxu0 0.0
    %634 = vmatpush1.msra.mxu0 %v561
    %635 = vmatprep.subr.mxu0 0.0
    %636 = vmatpush1.msra.mxu0 %v562
    %637 = vmatprep.subr.mxu0 0.0
    %638 = vmatpush1.msra.mxu0 %v563
    %639 = vmatprep.subr.mxu0 0.0
    %640 = vmatpush1.msra.mxu0 %v564
    %641 = vmatprep.subr.mxu0 0.0
    %642 = vmatpush1.msra.mxu0 %v565
    %643 = vmatprep.subr.mxu0 0.0
    %644 = vmatpush1.msra.mxu0 %v566
    %645 = vmatprep.subr.mxu0 0.0
    %646 = vmatpush1.msra.mxu0 %v567
    %647 = vmatprep.subr.mxu0 0.0
    %648 = vmatpush1.msra.mxu0 %v568
    %649 = vmatprep.subr.mxu0 0.0
    %650 = vmatpush1.msra.mxu0 %v569
    %651 = vmatprep.subr.mxu0 0.0
    %652 = vmatpush1.msra.mxu0 %v570
    %653 = vmatprep.subr.mxu0 0.0
    %654 = vmatpush1.msra.mxu0 %v571
    %655 = vmatprep.subr.mxu0 0.0
    %656 = vmatpush1.msra.mxu0 %v572
    %657 = vmatprep.subr.mxu0 0.0
    %658 = vmatpush1.msra.mxu0 %v573
    %659 = vmatprep.subr.mxu0 0.0
    %660 = vmatpush1.msra.mxu0 %v574
    %661 = vmatprep.mubr.f32.mxu0 %v513
    %662 = vmatmul.mubr.f32.gmra.mrb[0].mxu0 %v509
    %v663 = vpop.f32.mrb[0].mxu0
    %v664 = vadd.f32 %v595, %v663
    %v665 = vpop.f32.mrb[0].mxu0
    %666 = vmatprep.mubr.f32.mxu0 %v515
    %667 = vmatmul.mubr.f32.gmra.mrb[0].mxu0 %v497
    %v668 = vpop.f32.mrb[0].mxu0
    %v669 = vadd.f32 %v595, %v668
    %v670 = vpop.f32.mrb[0].mxu0
    %671 = vmatprep.mubr.f32.mxu0 %v517
    %672 = vmatmul.mubr.f32.gmra.mrb[0].mxu0 %v499
    %v673 = vpop.f32.mrb[0].mxu0
    %v674 = vadd.f32 %v595, %v673
    %v675 = vpop.f32.mrb[0].mxu0
    %676 = vmatprep.mubr.f32.mxu0 %v519
    %677 = vmatmul.mubr.f32.gmra.mrb[0].mxu0 %v501
    %v678 = vpop.f32.mrb[0].mxu0
    %v679 = vadd.f32 %v595, %v678
    %v680 = vpop.f32.mrb[0].mxu0
    %681 = vmatprep.mubr.f32.mxu0 %v521
    %682 = vmatmul.mubr.f32.gmra.mrb[0].mxu0 %v503
    %v683 = vpop.f32.mrb[0].mxu0
    %v684 = vadd.f32 %v595, %v683
    %v685 = vpop.f32.mrb[0].mxu0
    %686 = vdwg.mxu0
    %687 = vmatprep.subr.mxu0 0.0
    %688 = vmatpush1.msra.mxu0 %v575
    %689 = vmatprep.subr.mxu0 0.0
    %690 = vmatpush1.msra.mxu0 %v576
    %691 = vmatprep.subr.mxu0 0.0
    %692 = vmatpush1.msra.mxu0 %v577
    %693 = vmatprep.subr.mxu0 0.0
    %694 = vmatpush1.msra.mxu0 %v578
    %695 = vmatprep.subr.mxu0 0.0
    %696 = vmatpush1.msra.mxu0 %v579
    %697 = vmatprep.subr.mxu0 0.0
    %698 = vmatpush1.msra.mxu0 %v580
    %699 = vmatprep.subr.mxu0 0.0
    %700 = vmatpush1.msra.mxu0 %v581
    %701 = vmatprep.subr.mxu0 0.0
    %702 = vmatpush1.msra.mxu0 %v582
    %703 = vmatprep.subr.mxu0 0.0
    %704 = vmatpush1.msra.mxu0 %v583
    %705 = vmatprep.subr.mxu0 0.0
    %706 = vmatpush1.msra.mxu0 %v584
    %707 = vmatprep.subr.mxu0 0.0
    %708 = vmatpush1.msra.mxu0 %v585
    %709 = vmatprep.subr.mxu0 0.0
    %710 = vmatpush1.msra.mxu0 %v586
    %711 = vmatprep.subr.mxu0 0.0
    %712 = vmatpush1.msra.mxu0 %v587
    %713 = vmatprep.subr.mxu0 0.0
    %714 = vmatpush1.msra.mxu0 %v588
    %715 = vmatprep.subr.mxu0 0.0
    %716 = vmatpush1.msra.mxu0 %v589
    %717 = vmatprep.subr.mxu0 0.0
    %718 = vmatpush1.msra.mxu0 %v590
    %719 = vmatprep.subr.mxu0 0.0
    %720 = vmatpush1.msra.mxu0 0.0
    %721 = vmatprep.subr.mxu0 0.0
    %722 = vmatpush1.msra.mxu0 0.0
    %723 = vmatprep.subr.mxu0 0.0
    %724 = vmatpush1.msra.mxu0 0.0
    %725 = vmatprep.subr.mxu0 0.0
    %726 = vmatpush1.msra.mxu0 0.0
    %727 = vmatprep.subr.mxu0 0.0
    %728 = vmatpush1.msra.mxu0 0.0
    %729 = vmatprep.subr.mxu0 0.0
    %730 = vmatpush1.msra.mxu0 0.0
    %731 = vmatprep.subr.mxu0 0.0
    %732 = vmatpush1.msra.mxu0 0.0
    %733 = vmatprep.subr.mxu0 0.0
    %734 = vmatpush1.msra.mxu0 0.0
    %735 = vmatprep.subr.mxu0 0.0
    %736 = vmatpush1.msra.mxu0 0.0
    %737 = vmatprep.subr.mxu0 0.0
    %738 = vmatpush1.msra.mxu0 0.0
    %739 = vmatprep.subr.mxu0 0.0
    %740 = vmatpush1.msra.mxu0 0.0
    %741 = vmatprep.subr.mxu0 0.0
    %742 = vmatpush1.msra.mxu0 0.0
    %743 = vmatprep.subr.mxu0 0.0
    %744 = vmatpush1.msra.mxu0 0.0
    %745 = vmatprep.subr.mxu0 0.0
    %746 = vmatpush1.msra.mxu0 0.0
    %747 = vmatprep.subr.mxu0 0.0
    %748 = vmatpush1.msra.mxu0 0.0
    %749 = vmatprep.subr.mxu0 0.0
    %750 = vmatpush1.msra.mxu0 0.0
    %751 = vmatprep.mubr.f32.mxu0 0.0
    %752 = vmatmul.mubr.f32.gmra.mrb[0].mxu0 %v529
    %v753 = vpop.f32.mrb[0].mxu0
    %v754 = vadd.f32 %v664, %v753
    %v755 = vpop.f32.mrb[0].mxu0
    %756 = vmatprep.mubr.f32.mxu0 0.0
    %757 = vmatmul.mubr.f32.gmra.mrb[0].mxu0 %v531
    %v758 = vpop.f32.mrb[0].mxu0
    %v759 = vadd.f32 %v669, %v758
    %v760 = vpop.f32.mrb[0].mxu0
    %761 = vmatprep.mubr.f32.mxu0 0.0
    %762 = vmatmul.mubr.f32.gmra.mrb[0].mxu0 %v533
    %v763 = vpop.f32.mrb[0].mxu0
    %v764 = vadd.f32 %v674, %v763
    %v765 = vpop.f32.mrb[0].mxu0
    %766 = vmatprep.mubr.f32.mxu0 0.0
    %767 = vmatmul.mubr.f32.gmra.mrb[0].mxu0 %v535
    %v768 = vpop.f32.mrb[0].mxu0
    %v769 = vadd.f32 %v679, %v768
    %v770 = vpop.f32.mrb[0].mxu0
    %771 = vmatprep.mubr.f32.mxu0 0.0
    %772 = vmatmul.mubr.f32.gmra.mrb[0].mxu0 %v537
    %v773 = vpop.f32.mrb[0].mxu0
    %v774 = vadd.f32 %v684, %v773
    %v775 = vpop.f32.mrb[0].mxu0
    %776 = vdwg.mxu0
    %v777 = vmax.f32 %v754, 0.0
    %v778 = vmax.f32 %v759, 0.0
    %v779 = vmax.f32 %v764, 0.0
    %v780 = vmax.f32 %v769, 0.0
    %v781 = vmax.f32 %v774, 0.0
    %v782 = vld [vmem:[#allocation8] sm:$0xff]
    %v783 = vld [vmem:[#allocation8 + $0x8] sm:$0xff]
    %v784 = vld [vmem:[#allocation8 + $0x10] sm:$0xff]
    %v785 = vld [vmem:[#allocation8 + $0x18] sm:$0xff]
    %v786 = vld [vmem:[#allocation8 + $0x20] sm:$0xff]
    %v787 = vld [vmem:[#allocation8 + $0x28] sm:$0xff]
    %v788 = vld [vmem:[#allocation8 + $0x30] sm:$0xff]
    %v789 = vld [vmem:[#allocation8 + $0x38] sm:$0xff]
    %v790 = vld [vmem:[#allocation8 + $0x40] sm:$0xff]
    %v791 = vld [vmem:[#allocation8 + $0x48] sm:$0xff]
    %v792 = vld [vmem:[#allocation8 + $0x50] sm:$0xff]
    %v793 = vld [vmem:[#allocation8 + $0x58] sm:$0xff]
    %v794 = vld [vmem:[#allocation8 + $0x60] sm:$0xff]
    %v795 = vld [vmem:[#allocation8 + $0x68] sm:$0xff]
    %v796 = vld [vmem:[#allocation8 + $0x70] sm:$0xff]
    %v797 = vld [vmem:[#allocation8 + $0x78] sm:$0xff]
    %v799 = vlaneseq
    %v800 = vshrl.u32 %v799, 7
    %v801 = vsub.s32 0, %v800
    %v802 = vrot.slane %v180, %v801
    %804 = vmatprep.subr.mxu0 0.0
    %805 = vmatpush1.msra.mxu0 %v782
    %806 = vmatprep.subr.mxu0 0.0
    %807 = vmatpush1.msra.mxu0 %v783
    %808 = vmatprep.subr.mxu0 0.0
    %809 = vmatpush1.msra.mxu0 %v784
    %810 = vmatprep.subr.mxu0 0.0
    %811 = vmatpush1.msra.mxu0 %v785
    %812 = vmatprep.subr.mxu0 0.0
    %813 = vmatpush1.msra.mxu0 %v786
    %814 = vmatprep.subr.mxu0 0.0
    %815 = vmatpush1.msra.mxu0 %v787
    %816 = vmatprep.subr.mxu0 0.0
    %817 = vmatpush1.msra.mxu0 %v788
    %818 = vmatprep.subr.mxu0 0.0
    %819 = vmatpush1.msra.mxu0 %v789
    %820 = vmatprep.subr.mxu0 0.0
    %821 = vmatpush1.msra.mxu0 %v790
    %822 = vmatprep.subr.mxu0 0.0
    %823 = vmatpush1.msra.mxu0 %v791
    %824 = vmatprep.subr.mxu0 0.0
    %825 = vmatpush1.msra.mxu0 %v792
    %826 = vmatprep.subr.mxu0 0.0
    %827 = vmatpush1.msra.mxu0 %v793
    %828 = vmatprep.subr.mxu0 0.0
    %829 = vmatpush1.msra.mxu0 %v794
    %830 = vmatprep.subr.mxu0 0.0
    %831 = vmatpush1.msra.mxu0 %v795
    %832 = vmatprep.subr.mxu0 0.0
    %833 = vmatpush1.msra.mxu0 %v796
    %834 = vmatprep.subr.mxu0 0.0
    %835 = vmatpush1.msra.mxu0 %v797
    %836 = vmatprep.subr.mxu0 0.0
    %837 = vmatpush1.msra.mxu0 0.0
    %838 = vmatprep.subr.mxu0 0.0
    %839 = vmatpush1.msra.mxu0 0.0
    %840 = vmatprep.subr.mxu0 0.0
    %841 = vmatpush1.msra.mxu0 0.0
    %842 = vmatprep.subr.mxu0 0.0
    %843 = vmatpush1.msra.mxu0 0.0
    %844 = vmatprep.subr.mxu0 0.0
    %845 = vmatpush1.msra.mxu0 0.0
    %846 = vmatprep.subr.mxu0 0.0
    %847 = vmatpush1.msra.mxu0 0.0
    %848 = vmatprep.subr.mxu0 0.0
    %849 = vmatpush1.msra.mxu0 0.0
    %850 = vmatprep.subr.mxu0 0.0
    %851 = vmatpush1.msra.mxu0 0.0
    %852 = vmatprep.subr.mxu0 0.0
    %853 = vmatpush1.msra.mxu0 0.0
    %854 = vmatprep.subr.mxu0 0.0
    %855 = vmatpush1.msra.mxu0 0.0
    %856 = vmatprep.subr.mxu0 0.0
    %857 = vmatpush1.msra.mxu0 0.0
    %858 = vmatprep.subr.mxu0 0.0
    %859 = vmatpush1.msra.mxu0 0.0
    %860 = vmatprep.subr.mxu0 0.0
    %861 = vmatpush1.msra.mxu0 0.0
    %862 = vmatprep.subr.mxu0 0.0
    %863 = vmatpush1.msra.mxu0 0.0
    %864 = vmatprep.subr.mxu0 0.0
    %865 = vmatpush1.msra.mxu0 0.0
    %866 = vmatprep.subr.mxu0 0.0
    %867 = vmatpush1.msra.mxu0 0.0
    %868 = vmatprep.mubr.f32.mxu0 0.0
    %869 = vmatmul.mubr.f32.gmra.mrb[0].mxu0 %v82
    %v870 = vpop.f32.mrb[0].mxu0
    %v871 = vadd.f32 %v802, %v870
    %v872 = vpop.f32.mrb[0].mxu0
    %873 = vmatprep.mubr.f32.mxu0 0.0
    %874 = vmatmul.mubr.f32.gmra.mrb[0].mxu0 %v83
    %v875 = vpop.f32.mrb[0].mxu0
    %v876 = vadd.f32 %v802, %v875
    %v877 = vpop.f32.mrb[0].mxu0
    %878 = vmatprep.mubr.f32.mxu0 0.0
    %879 = vmatmul.mubr.f32.gmra.mrb[0].mxu0 %v84
    %v880 = vpop.f32.mrb[0].mxu0
    %v881 = vadd.f32 %v802, %v880
    %v882 = vpop.f32.mrb[0].mxu0
    %883 = vmatprep.mubr.f32.mxu0 0.0
    %884 = vmatmul.mubr.f32.gmra.mrb[0].mxu0 %v85
    %v885 = vpop.f32.mrb[0].mxu0
    %v886 = vadd.f32 %v802, %v885
    %v887 = vpop.f32.mrb[0].mxu0
    %888 = vmatprep.mubr.f32.mxu0 0.0
    %889 = vmatmul.mubr.f32.gmra.mrb[0].mxu0 %v86
    %v890 = vpop.f32.mrb[0].mxu0
    %v891 = vadd.f32 %v802, %v890
    %v892 = vpop.f32.mrb[0].mxu0
    %893 = vdwg.mxu0
    %v894 = vadd.f32 %v777, %v871
    %v895 = vadd.f32 %v778, %v876
    %v896 = vadd.f32 %v779, %v881
    %v897 = vadd.f32 %v780, %v886
    %v898 = vadd.f32 %v781, %v891
    %v899 = vmax.f32 %v894, 0.0
    %v900 = vmax.f32 %v895, 0.0
    %v901 = vmax.f32 %v896, 0.0
    %v902 = vmax.f32 %v897, 0.0
    %v903 = vmax.f32 %v898, 0.0
    %904 = vst [vmem:[#allocation10] sm:$0xff] %v899
    %905 = vst [vmem:[#allocation10 + $0x8] sm:$0xff] %v900
    %906 = vst [vmem:[#allocation10 + $0x10] sm:$0xff] %v901
    %907 = vst [vmem:[#allocation10 + $0x18] sm:$0xff] %v902
    %908 = vst [vmem:[#allocation10 + $0x20] sm:$0xff] %v903
    // Predicated region
    $region46: #{tpu_custom_call.1} parent=1 // pred_check
      _
    $region47: #{tpu_custom_call.1} parent=1 // pred_check_branch
      %910 = sbr.rel (0) target = $region49
    $region48: #{tpu_custom_call.1} parent=1 // pred_region
      %s912 = ssub.s32 640, 640
      %913 = vsyncadd [#allocation4], %s912
      %s914 = sshll.u32 [#allocation10], 4
      %s915 = int_to_ptr.vmem [resolvable:$true] %s914
      %920 = dma.vmem_to_hbm [thread:$0]  %s915, 640, %s7, [#allocation4], 128, 128, 8
    $region49: #{tpu_custom_call.1} parent=1 // pred_fallthru
      _
    // Predicated region
    $region50: #{tpu_custom_call.1} parent=1 // pred_check
      _
    $region51: #{tpu_custom_call.1} parent=1 // pred_check_branch
      %922 = sbr.rel (0) target = $region53
    $region52: #{tpu_custom_call.1} parent=1 // pred_region
      %923 = dma.done [#allocation4], 640
    $region53: #{tpu_custom_call.1} parent=1 // pred_fallthru
      _
    %924 = vsyncpa [#allocation3], 1
    %925 = vsyncpa [#allocation6], 1
    %926 = vsyncpa [#allocation9], 1
    %927 = vsyncpa [#allocation4], 1

</llo_original>
